<compile_context>
chip_gen: v6e
topology: v6e:2x2x1
jax: 0.10.0
libtpu: 0.0.40
codegen_flags: <defaults>
</compile_context>

<pallas_src>
import jax
import jax.numpy as jnp
from jax.experimental import pallas as pl
from jax.experimental.pallas import tpu as pltpu


def _round_up(x, m):
    return ((x + m - 1) // m) * m


def critic_kernel(x_ref, w1_ref, b1_ref, w2_ref, b2_ref, w3_ref, b3_ref, out_ref):
    f32, bf16 = jnp.float32, jnp.bfloat16

    # fc1 + ReLU: bf16 MXU inputs, f32 accumulate; elementwise stays f32 (v5e-safe).
    h1 = jnp.dot(x_ref[...].astype(bf16), w1_ref[...],
                 preferred_element_type=f32) + b1_ref[...]
    h1 = jnp.maximum(h1, 0.0)

    # fc2 + ReLU
    h2 = jnp.dot(h1.astype(bf16), w2_ref[...],
                 preferred_element_type=f32) + b2_ref[...]
    h2 = jnp.maximum(h2, 0.0)

    # fc3 (width-1 value head): VPU multiply + cross-lane sum (XLU) instead of a
    # padded 128-wide MXU matmul; the (tb, 1) column is stored as-is, so the
    # per-step HBM writeback is tb*4 bytes of purely useful data.
    v = jnp.sum(h2 * w3_ref[...], axis=-1, keepdims=True) + b3_ref[0]
    out_ref[...] = v


def _default_batch_tile(batch):
    # v6e/v7x MXU is 256 rows tall (v5e is 128); keep >= 2 parallel grid steps
    # when the batch allows it so both v7x TensorCores get work.
    if batch > 512:
        return 256
    return 128


def critic_forward(params, x, *, tb=None):
    """Pallas implementation of Critic.forward. Returns (B, 1) f32 values."""
    B, in_dim = x.shape
    H = params["w1"].shape[1]

    if tb is None:
        tb = _default_batch_tile(B)
    tb = min(tb, _round_up(B, 8))

    # Pad only when the whole batch is smaller than one tile; otherwise the
    # ragged last tile is handled by Pallas (grid = cdiv, partial edge block).
    Bp = B
    if B < tb:
        Bp = tb
        x = jnp.pad(x, ((0, tb - B), (0, 0)))
    grid = (pl.cdiv(Bp, tb),)

    flops = 2 * B * (in_dim * H + H * H + H)
    bytes_accessed = (
        int(x.size) * x.dtype.itemsize
        + sum(int(params[k].size) * params[k].dtype.itemsize
              for k in ("w1", "b1", "w2", "b2", "w3", "b3"))
        + B * 4)

    out = pl.pallas_call(
        critic_kernel,
        out_shape=jax.ShapeDtypeStruct((Bp, 1), jnp.float32),
        grid=grid,
        in_specs=[
            pl.BlockSpec((tb, in_dim), lambda i: (i, 0)),        # x: pipelined over batch
            pl.BlockSpec((in_dim, H), lambda i: (0, 0)),         # w1 (VMEM-resident)
            pl.BlockSpec((1, H), lambda i: (0, 0)),              # b1 (VMEM-resident)
            pl.BlockSpec((H, H), lambda i: (0, 0)),              # w2 (VMEM-resident)
            pl.BlockSpec((1, H), lambda i: (0, 0)),              # b2 (VMEM-resident)
            pl.BlockSpec((1, H), lambda i: (0, 0)),              # w3 row (VMEM-resident)
            pl.BlockSpec(memory_space=pltpu.MemorySpace.SMEM),   # b3 scalar
        ],
        out_specs=pl.BlockSpec((tb, 1), lambda i: (i, 0)),       # (tb, 1) column per step
        compiler_params=pltpu.CompilerParams(
            dimension_semantics=("parallel",)),
        cost_estimate=pl.CostEstimate(
            flops=flops, transcendentals=0, bytes_accessed=bytes_accessed),
    )(x, params["w1"], params["b1"], params["w2"], params["b2"],
      params["w3"], params["b3"])

    return out if Bp == B else out[:B]


def init_params(key, input_dim, hidden_dim):
    """Synthetic parameters. Hidden weights stored (in, out)-transposed vs torch and
    bf16 for the MXU; fc3 kept as its natural (1, hidden) torch row in f32 (VPU head)."""
    ks = jax.random.split(key, 6)

    def lin_w(k, din, dout):
        return jax.random.normal(k, (din, dout), jnp.float32) / jnp.sqrt(din)

    def lin_b(k, dout):
        return jax.random.normal(k, (1, dout), jnp.float32) * 0.01

    return {
        "w1": lin_w(ks[0], input_dim, hidden_dim).astype(jnp.bfloat16),
        "b1": lin_b(ks[1], hidden_dim),                       # (1, H) f32
        "w2": lin_w(ks[2], hidden_dim, hidden_dim).astype(jnp.bfloat16),
        "b2": lin_b(ks[3], hidden_dim),                       # (1, H) f32
        "w3": lin_w(ks[4], hidden_dim, 1).T,                  # (1, H) f32 row
        "b3": lin_b(ks[5], 1).reshape(1),                     # (1,) f32 scalar (SMEM)
    }


def critic_reference(params, x):
    """Pure-JAX reference replicating the kernel's bf16-input / f32-accumulate math."""
    bf16, f32 = jnp.bfloat16, jnp.float32
    h1 = jnp.maximum(jnp.dot(x.astype(bf16), params["w1"],
                             preferred_element_type=f32) + params["b1"], 0.0)
    h2 = jnp.maximum(jnp.dot(h1.astype(bf16), params["w2"],
                             preferred_element_type=f32) + params["b2"], 0.0)
    return jnp.sum(h2 * params["w3"], axis=-1, keepdims=True) + params["b3"]


if __name__ == "__main__":
    B, INPUT_DIM, HIDDEN_DIM = 200, 64, 256   # hidden_dim matches the module default

    key = jax.random.PRNGKey(0)
    k_x, k_p = jax.random.split(key)
    x = jax.random.normal(k_x, (B, INPUT_DIM), jnp.float32)
    params = init_params(k_p, INPUT_DIM, HIDDEN_DIM)

    value = critic_forward(params, x)          # ragged batch: grid=(2,), tb=128
    jax.block_until_ready(value)

    ref = critic_reference(params, x)
    assert value.shape == (B, 1) and value.dtype == jnp.float32
    max_err = float(jnp.max(jnp.abs(value - ref)))
    assert max_err < 2e-3, max_err

    print("KERNEL_OK")
</pallas_src>

<mosaic_0001>
module attributes {stable_mosaic.version = 11 : i64} {
  func.func @critic_kernel(%arg0: i32, %arg1: memref<128x64xf32, #tpu.memory_space<vmem>>, %arg2: memref<64x256xbf16, #tpu.memory_space<vmem>>, %arg3: memref<1x256xf32, #tpu.memory_space<vmem>>, %arg4: memref<256x256xbf16, #tpu.memory_space<vmem>>, %arg5: memref<1x256xf32, #tpu.memory_space<vmem>>, %arg6: memref<1x256xf32, #tpu.memory_space<vmem>>, %arg7: memref<1xf32, #tpu.memory_space<smem>>, %arg8: memref<128x1xf32, #tpu.memory_space<vmem>>) attributes {dimension_semantics = [#tpu.dimension_semantics<parallel>], iteration_bounds = array<i64: 2>, scalar_prefetch = 0 : i64, scratch_operands = 0 : i64, tpu.core_type = #tpu.core_type<tc>, window_params = [{transform_indices = @transform_0, window_bounds = array<i64: 128, 64>}, {pipeline_mode = #tpu.pipeline_mode<synchronous>, transform_indices = @transform_1, window_bounds = array<i64: 64, 256>}, {pipeline_mode = #tpu.pipeline_mode<synchronous>, transform_indices = @transform_2, window_bounds = array<i64: 1, 256>}, {pipeline_mode = #tpu.pipeline_mode<synchronous>, transform_indices = @transform_3, window_bounds = array<i64: 256, 256>}, {pipeline_mode = #tpu.pipeline_mode<synchronous>, transform_indices = @transform_4, window_bounds = array<i64: 1, 256>}, {pipeline_mode = #tpu.pipeline_mode<synchronous>, transform_indices = @transform_5, window_bounds = array<i64: 1, 256>}, {transform_indices = @transform_6, window_bounds = array<i64: 1>}, {transform_indices = @transform_7, window_bounds = array<i64: 128, 1>}]} {
    %c0 = arith.constant 0 : index
    %c0_0 = arith.constant 0 : index
    %0 = vector.load %arg1[%c0, %c0_0] : memref<128x64xf32, #tpu.memory_space<vmem>>, vector<128x64xf32>
    %1 = arith.truncf %0 : vector<128x64xf32> to vector<128x64xbf16>
    %c0_1 = arith.constant 0 : index
    %c0_2 = arith.constant 0 : index
    %2 = vector.load %arg2[%c0_1, %c0_2] : memref<64x256xbf16, #tpu.memory_space<vmem>>, vector<64x256xbf16>
    %cst = arith.constant dense<0.000000e+00> : vector<128x256xf32>
    %3 = tpu.matmul %1, %2, %cst {dimension_numbers = #tpu.dot_dimension_numbers<[1], [0], [0], [1], [0, 0, 1, 1], [], []>} : vector<128x64xbf16>, vector<64x256xbf16>, vector<128x256xf32> -> vector<128x256xf32>
    %c0_3 = arith.constant 0 : index
    %c0_4 = arith.constant 0 : index
    %4 = vector.load %arg3[%c0_3, %c0_4] : memref<1x256xf32, #tpu.memory_space<vmem>>, vector<1x256xf32>
    %5 = vector.broadcast %4 : vector<1x256xf32> to vector<128x256xf32>
    %6 = arith.addf %3, %5 : vector<128x256xf32>
    %cst_5 = arith.constant 0.000000e+00 : f32
    %7 = vector.broadcast %cst_5 : f32 to vector<128x256xf32>
    %8 = arith.maximumf %6, %7 : vector<128x256xf32>
    %9 = arith.truncf %8 : vector<128x256xf32> to vector<128x256xbf16>
    %c0_6 = arith.constant 0 : index
    %c0_7 = arith.constant 0 : index
    %10 = vector.load %arg4[%c0_6, %c0_7] : memref<256x256xbf16, #tpu.memory_space<vmem>>, vector<256x256xbf16>
    %cst_8 = arith.constant dense<0.000000e+00> : vector<128x256xf32>
    %11 = tpu.matmul %9, %10, %cst_8 {dimension_numbers = #tpu.dot_dimension_numbers<[1], [0], [0], [1], [0, 0, 1, 1], [], []>} : vector<128x256xbf16>, vector<256x256xbf16>, vector<128x256xf32> -> vector<128x256xf32>
    %c0_9 = arith.constant 0 : index
    %c0_10 = arith.constant 0 : index
    %12 = vector.load %arg5[%c0_9, %c0_10] : memref<1x256xf32, #tpu.memory_space<vmem>>, vector<1x256xf32>
    %13 = vector.broadcast %12 : vector<1x256xf32> to vector<128x256xf32>
    %14 = arith.addf %11, %13 : vector<128x256xf32>
    %cst_11 = arith.constant 0.000000e+00 : f32
    %15 = vector.broadcast %cst_11 : f32 to vector<128x256xf32>
    %16 = arith.maximumf %14, %15 : vector<128x256xf32>
    %c0_12 = arith.constant 0 : index
    %c0_13 = arith.constant 0 : index
    %17 = vector.load %arg6[%c0_12, %c0_13] : memref<1x256xf32, #tpu.memory_space<vmem>>, vector<1x256xf32>
    %18 = vector.broadcast %17 : vector<1x256xf32> to vector<128x256xf32>
    %19 = arith.mulf %16, %18 : vector<128x256xf32>
    %cst_14 = arith.constant dense<0.000000e+00> : vector<128xf32>
    %20 = vector.multi_reduction <add>, %19, %cst_14 [1] : vector<128x256xf32> to vector<128xf32>
    %21 = vector.shape_cast %20 : vector<128xf32> to vector<128x1xf32>
    %c0_15 = arith.constant 0 : index
    %22 = memref.load %arg7[%c0_15] : memref<1xf32, #tpu.memory_space<smem>>
    %23 = vector.broadcast %22 : f32 to vector<128x1xf32>
    %24 = arith.addf %21, %23 : vector<128x1xf32>
    %c0_16 = arith.constant 0 : index
    %c0_17 = arith.constant 0 : index
    %25 = vector.load %arg8[%c0_16, %c0_17] : memref<128x1xf32, #tpu.memory_space<vmem>>, vector<128x1xf32>
    tpu.vector_store %arg8[%c0_16, %c0_17], %24 {strides = array<i32>} : memref<128x1xf32, #tpu.memory_space<vmem>>, vector<128x1xf32>,
    return
  }
  func.func @transform_0(%arg0: i32) -> (i32, i32) {
    %c0_i32 = arith.constant 0 : i32
    %c0_i32_0 = arith.constant 0 : i32
    return %arg0, %c0_i32 : i32, i32
  }
  func.func @transform_1(%arg0: i32) -> (i32, i32) {
    %c0_i32 = arith.constant 0 : i32
    %c0_i32_0 = arith.constant 0 : i32
    %c0_i32_1 = arith.constant 0 : i32
    return %c0_i32, %c0_i32_0 : i32, i32
  }
  func.func @transform_2(%arg0: i32) -> (i32, i32) {
    %c0_i32 = arith.constant 0 : i32
    %c0_i32_0 = arith.constant 0 : i32
    %c0_i32_1 = arith.constant 0 : i32
    return %c0_i32, %c0_i32_0 : i32, i32
  }
  func.func @transform_3(%arg0: i32) -> (i32, i32) {
    %c0_i32 = arith.constant 0 : i32
    %c0_i32_0 = arith.constant 0 : i32
    %c0_i32_1 = arith.constant 0 : i32
    return %c0_i32, %c0_i32_0 : i32, i32
  }
  func.func @transform_4(%arg0: i32) -> (i32, i32) {
    %c0_i32 = arith.constant 0 : i32
    %c0_i32_0 = arith.constant 0 : i32
    %c0_i32_1 = arith.constant 0 : i32
    return %c0_i32, %c0_i32_0 : i32, i32
  }
  func.func @transform_5(%arg0: i32) -> (i32, i32) {
    %c0_i32 = arith.constant 0 : i32
    %c0_i32_0 = arith.constant 0 : i32
    %c0_i32_1 = arith.constant 0 : i32
    return %c0_i32, %c0_i32_0 : i32, i32
  }
  func.func @transform_6(%arg0: i32) -> i32 {
    %c0_i32 = arith.constant 0 : i32
    %c0_i32_0 = arith.constant 0 : i32
    return %c0_i32 : i32
  }
  func.func @transform_7(%arg0: i32) -> (i32, i32) {
    %c0_i32 = arith.constant 0 : i32
    %c0_i32_0 = arith.constant 0 : i32
    return %arg0, %c0_i32 : i32, i32
  }
}

</mosaic_0001>

<llo_original>
// kernel: tpu_custom_call.1
$region0: #{tpu_custom_call.1}
  #allocation0 [shape = 'u32[]', space=smem, size = 0x4, offset = 0x4, fixed_abs, tag = 'smem constant byte address 0x4 - core index']
  #allocation1 [shape = 'u32[144,128]{1,0:T(1,128)}', space=vmem, size = 0x12000, scoped, tag = 'internal scratch']
  #allocation2 [shape = 'f32[1]{0:T(128)S(6)}', space=smem, size = 0x200, scoped, tag = 'scoped memory for tpu_custom_call.1']
  %s0 = inlined_call_operand.vmem [shape: f32[200,64], index: 0, kind: input, shape index: {}]
  %s1 = inlined_call_operand.vmem [shape: bf16[64,256], index: 1, kind: input, shape index: {}]
  %s2 = inlined_call_operand.vmem [shape: f32[1,256], index: 2, kind: input, shape index: {}]
  %s3 = inlined_call_operand.vmem [shape: bf16[256,256], index: 3, kind: input, shape index: {}]
  %s4 = inlined_call_operand.vmem [shape: f32[1,256], index: 4, kind: input, shape index: {}]
  %s5 = inlined_call_operand.vmem [shape: f32[1,256], index: 5, kind: input, shape index: {}]
  %s6 = inlined_call_operand.<no memory space> [shape: f32[1], index: 6, kind: input, shape index: {}]
  %s7 = inlined_call_operand.vmem [shape: f32[200,1], index: 7, kind: output, shape index: {}]
  %s8 = sld [smem:[#allocation0]]
  $region109: #{tpu_custom_call.1} parent=0
    _
  %s10 = ssub.s32 1, %s8
  %s11 = scalar_select 0, %s10, %s8
  %12 = sst [smem:[#allocation2]] %s6
  $region1: #{tpu_custom_call.1} parent=0
    #allocation3 [shape = 'u8[131072]{0}', space=vmem, size = 0x20000, scoped, tag = 'output window, operand 0']
    loop: start=0, step=1, limit=4
    $region2: #{tpu_custom_call.1} parent=1 // loop_pre_header
      _
    $region3: #{tpu_custom_call.1} parent=1 // loop_header
      %s14 = sphi 0, %s18
      %p15 = scmp.ge.s32.totalorder %s14, 4
      %s24 = sphi 0, %s26
      %s27 = sphi 0, %s24
      %s28 = sphi 0, %s27
      %s44 = sphi 0, %s28
      %s48 = sphi 0, %s48
      %s50 = sphi 0, %s48
      %s51 = sphi 0, %s50
      %s65 = sphi 0, %s51
      %s69 = sphi 0, %s69
      %s71 = sphi 0, %s69
      %s72 = sphi 0, %s71
      %s86 = sphi 0, %s72
      %s90 = sphi 0, %s90
      %s92 = sphi 0, %s90
      %s93 = sphi 0, %s92
      %s107 = sphi 0, %s93
      %s111 = sphi 0, %s111
      %s113 = sphi 0, %s111
      %s114 = sphi 0, %s113
      %s128 = sphi 0, %s114
      %s132 = sphi 0, %s132
      %s134 = sphi 0, %s132
      %s135 = sphi 0, %s134
      %s149 = sphi 0, %s135
      %s153 = sphi 0, %s153
      %s155 = sphi 0, %s153
      %s156 = sphi 0, %s155
      %s170 = sphi 0, %s156
      %s176 = sphi 0, %s178
      %s179 = sphi 0, %s176
      %s180 = sphi 0, %s179
      %s196 = sphi 0, %s180
    $region4: #{tpu_custom_call.1} parent=1 // loop_header_branch
      %17 = sbr.rel (%p15) target = $region8
    $region5: #{tpu_custom_call.1} parent=1 // loop_body
      %s19 = ssub.s32 %s14, 1
      %s20 = ssub.s32 %s14, 2
      %s21 = sadd.s32 %s14, 1
      %s22 = ssub.s32 %s14, %s21
      %p23 = scmp.eq.s32.totalorder %s22, 0
      %s25 = sadd.s32 %s24, 1
      %s26 = scalar_select %p23, %s24, %s25
      %p29 = pneg %p23
      %p30 = scmp.eq.s32.totalorder %s14, 1
      %p31 = por %p29, %p30
      %p32 = scmp.ne.s32.totalorder %s24, %s27
      %p33 = scmp.eq.s32.totalorder %s14, 0
      %p34 = por %p32, %p33
      %p35 = scmp.ne.s32.totalorder %s24, %s27
      %p36 = scmp.eq.s32.totalorder %s19, 1
      %p37 = por %p35, %p36
      %p38 = scmp.ne.s32.totalorder %s27, %s28
      %p39 = scmp.eq.s32.totalorder %s19, 0
      %p40 = por %p38, %p39
      %p41 = scmp.ne.s32.totalorder %s27, %s28
      %p42 = scmp.eq.s32.totalorder %s20, 1
      %p43 = por %p41, %p42
      %p45 = scmp.ne.s32.totalorder %s28, %s44
      %p46 = scmp.eq.s32.totalorder %s20, 0
      %p47 = por %p45, %p46
      %s49 = sadd.s32 %s48, 1
      %p52 = scmp.eq.s32.totalorder %s14, 1
      %p53 = scmp.ne.s32.totalorder %s48, %s50
      %p54 = scmp.eq.s32.totalorder %s14, 0
      %p55 = por %p53, %p54
      %p56 = scmp.ne.s32.totalorder %s48, %s50
      %p57 = scmp.eq.s32.totalorder %s19, 1
      %p58 = por %p56, %p57
      %p59 = scmp.ne.s32.totalorder %s50, %s51
      %p60 = scmp.eq.s32.totalorder %s19, 0
      %p61 = por %p59, %p60
      %p62 = scmp.ne.s32.totalorder %s50, %s51
      %p63 = scmp.eq.s32.totalorder %s20, 1
      %p64 = por %p62, %p63
      %p66 = scmp.ne.s32.totalorder %s51, %s65
      %p67 = scmp.eq.s32.totalorder %s20, 0
      %p68 = por %p66, %p67
      %s70 = sadd.s32 %s69, 1
      %p73 = scmp.eq.s32.totalorder %s14, 1
      %p74 = scmp.ne.s32.totalorder %s69, %s71
      %p75 = scmp.eq.s32.totalorder %s14, 0
      %p76 = por %p74, %p75
      %p77 = scmp.ne.s32.totalorder %s69, %s71
      %p78 = scmp.eq.s32.totalorder %s19, 1
      %p79 = por %p77, %p78
      %p80 = scmp.ne.s32.totalorder %s71, %s72
      %p81 = scmp.eq.s32.totalorder %s19, 0
      %p82 = por %p80, %p81
      %p83 = scmp.ne.s32.totalorder %s71, %s72
      %p84 = scmp.eq.s32.totalorder %s20, 1
      %p85 = por %p83, %p84
      %p87 = scmp.ne.s32.totalorder %s72, %s86
      %p88 = scmp.eq.s32.totalorder %s20, 0
      %p89 = por %p87, %p88
      %s91 = sadd.s32 %s90, 1
      %p94 = scmp.eq.s32.totalorder %s14, 1
      %p95 = scmp.ne.s32.totalorder %s90, %s92
      %p96 = scmp.eq.s32.totalorder %s14, 0
      %p97 = por %p95, %p96
      %p98 = scmp.ne.s32.totalorder %s90, %s92
      %p99 = scmp.eq.s32.totalorder %s19, 1
      %p100 = por %p98, %p99
      %p101 = scmp.ne.s32.totalorder %s92, %s93
      %p102 = scmp.eq.s32.totalorder %s19, 0
      %p103 = por %p101, %p102
      %p104 = scmp.ne.s32.totalorder %s92, %s93
      %p105 = scmp.eq.s32.totalorder %s20, 1
      %p106 = por %p104, %p105
      %p108 = scmp.ne.s32.totalorder %s93, %s107
      %p109 = scmp.eq.s32.totalorder %s20, 0
      %p110 = por %p108, %p109
      %s112 = sadd.s32 %s111, 1
      %p115 = scmp.eq.s32.totalorder %s14, 1
      %p116 = scmp.ne.s32.totalorder %s111, %s113
      %p117 = scmp.eq.s32.totalorder %s14, 0
      %p118 = por %p116, %p117
      %p119 = scmp.ne.s32.totalorder %s111, %s113
      %p120 = scmp.eq.s32.totalorder %s19, 1
      %p121 = por %p119, %p120
      %p122 = scmp.ne.s32.totalorder %s113, %s114
      %p123 = scmp.eq.s32.totalorder %s19, 0
      %p124 = por %p122, %p123
      %p125 = scmp.ne.s32.totalorder %s113, %s114
      %p126 = scmp.eq.s32.totalorder %s20, 1
      %p127 = por %p125, %p126
      %p129 = scmp.ne.s32.totalorder %s114, %s128
      %p130 = scmp.eq.s32.totalorder %s20, 0
      %p131 = por %p129, %p130
      %s133 = sadd.s32 %s132, 1
      %p136 = scmp.eq.s32.totalorder %s14, 1
      %p137 = scmp.ne.s32.totalorder %s132, %s134
      %p138 = scmp.eq.s32.totalorder %s14, 0
      %p139 = por %p137, %p138
      %p140 = scmp.ne.s32.totalorder %s132, %s134
      %p141 = scmp.eq.s32.totalorder %s19, 1
      %p142 = por %p140, %p141
      %p143 = scmp.ne.s32.totalorder %s134, %s135
      %p144 = scmp.eq.s32.totalorder %s19, 0
      %p145 = por %p143, %p144
      %p146 = scmp.ne.s32.totalorder %s134, %s135
      %p147 = scmp.eq.s32.totalorder %s20, 1
      %p148 = por %p146, %p147
      %p150 = scmp.ne.s32.totalorder %s135, %s149
      %p151 = scmp.eq.s32.totalorder %s20, 0
      %p152 = por %p150, %p151
      %s154 = sadd.s32 %s153, 1
      %p157 = scmp.eq.s32.totalorder %s14, 1
      %p158 = scmp.ne.s32.totalorder %s153, %s155
      %p159 = scmp.eq.s32.totalorder %s14, 0
      %p160 = por %p158, %p159
      %p161 = scmp.ne.s32.totalorder %s153, %s155
      %p162 = scmp.eq.s32.totalorder %s19, 1
      %p163 = por %p161, %p162
      %p164 = scmp.ne.s32.totalorder %s155, %s156
      %p165 = scmp.eq.s32.totalorder %s19, 0
      %p166 = por %p164, %p165
      %p167 = scmp.ne.s32.totalorder %s155, %s156
      %p168 = scmp.eq.s32.totalorder %s20, 1
      %p169 = por %p167, %p168
      %p171 = scmp.ne.s32.totalorder %s156, %s170
      %p172 = scmp.eq.s32.totalorder %s20, 0
      %p173 = por %p171, %p172
      %s174 = ssub.s32 %s14, %s21
      %p175 = scmp.eq.s32.totalorder %s174, 0
      %s177 = sadd.s32 %s176, 1
      %s178 = scalar_select %p175, %s176, %s177
      %p181 = pneg %p175
      %p182 = scmp.eq.s32.totalorder %s14, 1
      %p183 = por %p181, %p182
      %p184 = scmp.ne.s32.totalorder %s176, %s179
      %p185 = scmp.eq.s32.totalorder %s14, 0
      %p186 = por %p184, %p185
      %p187 = scmp.ne.s32.totalorder %s176, %s179
      %p188 = scmp.eq.s32.totalorder %s19, 1
      %p189 = por %p187, %p188
      %p190 = scmp.ne.s32.totalorder %s179, %s180
      %p191 = scmp.eq.s32.totalorder %s19, 0
      %p192 = por %p190, %p191
      %p193 = scmp.ne.s32.totalorder %s179, %s180
      %p194 = scmp.eq.s32.totalorder %s20, 1
      %p195 = por %p193, %p194
      %p197 = scmp.ne.s32.totalorder %s180, %s196
      %p198 = scmp.eq.s32.totalorder %s20, 0
      %p199 = por %p197, %p198
      %p200 = scmp.le.s32.totalorder 1, %s14
      %p201 = scmp.lt.s32.totalorder %s14, 3
      %p202 = pnand %p200, %p201
      %p203 = pneg %p202
      // Predicated region
      $region9: #{tpu_custom_call.1} parent=5 // pred_check
        _
      $region10: #{tpu_custom_call.1} parent=5 // pred_check_branch
        %205 = sbr.rel (%p202) target = $region12
      $region11: #{tpu_custom_call.1} parent=5 // pred_region
        %s206 = ssub.s32 %s14, 1
        // Predicated region
        $region13: #{tpu_custom_call.1} parent=11 // pred_check
          %p207 = pneg %p61
        $region14: #{tpu_custom_call.1} parent=11 // pred_check_branch
          %209 = sbr.rel (%p207) target = $region16
        $region15: #{tpu_custom_call.1} parent=11 // pred_region
          _
        $region16: #{tpu_custom_call.1} parent=11 // pred_fallthru
          _
        // Predicated region
        $region17: #{tpu_custom_call.1} parent=11 // pred_check
          %p210 = pneg %p82
        $region18: #{tpu_custom_call.1} parent=11 // pred_check_branch
          %212 = sbr.rel (%p210) target = $region20
        $region19: #{tpu_custom_call.1} parent=11 // pred_region
          _
        $region20: #{tpu_custom_call.1} parent=11 // pred_fallthru
          _
        // Predicated region
        $region21: #{tpu_custom_call.1} parent=11 // pred_check
          %p213 = pneg %p103
        $region22: #{tpu_custom_call.1} parent=11 // pred_check_branch
          %215 = sbr.rel (%p213) target = $region24
        $region23: #{tpu_custom_call.1} parent=11 // pred_region
          _
        $region24: #{tpu_custom_call.1} parent=11 // pred_fallthru
          _
        // Predicated region
        $region25: #{tpu_custom_call.1} parent=11 // pred_check
          %p216 = pneg %p124
        $region26: #{tpu_custom_call.1} parent=11 // pred_check_branch
          %218 = sbr.rel (%p216) target = $region28
        $region27: #{tpu_custom_call.1} parent=11 // pred_region
          _
        $region28: #{tpu_custom_call.1} parent=11 // pred_fallthru
          _
        // Predicated region
        $region29: #{tpu_custom_call.1} parent=11 // pred_check
          %p219 = pneg %p145
        $region30: #{tpu_custom_call.1} parent=11 // pred_check_branch
          %221 = sbr.rel (%p219) target = $region32
        $region31: #{tpu_custom_call.1} parent=11 // pred_region
          _
        $region32: #{tpu_custom_call.1} parent=11 // pred_fallthru
          _
        // Predicated region
        $region33: #{tpu_custom_call.1} parent=11 // pred_check
          %p222 = pneg %p166
        $region34: #{tpu_custom_call.1} parent=11 // pred_check_branch
          %224 = sbr.rel (%p222) target = $region36
        $region35: #{tpu_custom_call.1} parent=11 // pred_region
          _
        $region36: #{tpu_custom_call.1} parent=11 // pred_fallthru
          _
      $region12: #{tpu_custom_call.1} parent=5 // pred_fallthru
        _
      %p225 = scmp.lt.s32.totalorder %s14, 2
      // Predicated region
      $region37: #{tpu_custom_call.1} parent=5 // pred_check
        %p226 = pneg %p225
      $region38: #{tpu_custom_call.1} parent=5 // pred_check_branch
        %228 = sbr.rel (%p226) target = $region40
      $region39: #{tpu_custom_call.1} parent=5 // pred_region
        // Predicated region
        $region41: #{tpu_custom_call.1} parent=39 // pred_check
          %p229 = pneg %p34
        $region42: #{tpu_custom_call.1} parent=39 // pred_check_branch
          %231 = sbr.rel (%p229) target = $region44
        $region43: #{tpu_custom_call.1} parent=39 // pred_region
          %s232 = smul.u32 16, %s14
          %s233 = ssub.s32 25, %s232
          %p234 = scmp.lt.s32.totalorder %s233, 16
          %s235 = scalar_select %p234, %s233, 16
          %s236 = smul.u32 128, %s235
          %p237 = scmp.lt.s32.totalorder %s232, 24
          %s238 = scalar_select %p237, %s232, 24
          %s239 = smul.addr %s238, 8
          %s240 = scalar_lea.vmem %s0, %s239
          %s241 = smul.u32 16, %s14
          %s242 = ssub.s32 25, %s241
          %p243 = scmp.lt.s32.totalorder %s242, 16
          %s244 = scalar_select %p243, %s242, 16
          %s245 = smul.u32 128, %s244
        $region44: #{tpu_custom_call.1} parent=39 // pred_fallthru
          _
      $region40: #{tpu_custom_call.1} parent=5 // pred_fallthru
        _
      %p246 = scmp.le.s32.totalorder 1, %s14
      %p247 = scmp.lt.s32.totalorder %s14, 3
      %p248 = pnand %p246, %p247
      %p249 = pneg %p248
      // Predicated region
      $region45: #{tpu_custom_call.1} parent=5 // pred_check
        _
      $region46: #{tpu_custom_call.1} parent=5 // pred_check_branch
        %251 = sbr.rel (%p248) target = $region48
      $region47: #{tpu_custom_call.1} parent=5 // pred_region
        %s252 = ssub.s32 %s14, 1
        %s253 = smul.u32 16, %s19
        %s254 = ssub.s32 25, %s253
        %p255 = scmp.lt.s32.totalorder %s254, 16
        %s256 = scalar_select %p255, %s254, 16
        %s257 = smul.u32 128, %s256
        %p258 = scmp.lt.s32.totalorder %s253, 24
        %s259 = scalar_select %p258, %s253, 24
        %s260 = smul.addr %s259, 8
        %s261 = scalar_lea.vmem %s0, %s260
        %p262 = pneg %p40
        %p263 = pneg %p37
        %p264 = pneg %p61
        %p265 = pneg %p58
        %p266 = pneg %p82
        %p267 = pneg %p79
        %p268 = pneg %p103
        %p269 = pneg %p100
        %p270 = pneg %p124
        %p271 = pneg %p121
        %p272 = pneg %p145
        %p273 = pneg %p142
        %p274 = pneg %p166
        %p275 = pneg %p163
        %p276 = pneg %p192
        %p277 = pneg %p189
        %s278 = sand.u32 %s179, 1
        %s279 = sand.u32 %s179, 1
        %s280 = smul.addr %s279, 128
        %s281 = scalar_lea.vmem [#allocation3], %s280
        %s282 = smul.u32 16, %s19
        %s283 = ssub.s32 25, %s282
        %p284 = scmp.lt.s32.totalorder %s283, 16
        %s285 = scalar_select %p284, %s283, 16
        %s286 = smul.u32 128, %s285
        %p287 = scmp.lt.s32.totalorder %s282, 24
        %s288 = scalar_select %p287, %s282, 24
        %s289 = smul.addr %s288, 8
        %s290 = scalar_lea.vmem %s0, %s289
        %s291 = smul.u32 16, %s19
        %s292 = ssub.s32 25, %s291
        %p293 = scmp.lt.s32.totalorder %s292, 16
        %s294 = scalar_select %p293, %s292, 16
        %s295 = smul.u32 128, %s294
        %s296 = smul.u32 16, %s19
        %s297 = ssub.s32 25, %s296
        %p298 = scmp.lt.s32.totalorder %s297, 16
        %s299 = scalar_select %p298, %s297, 16
        %s300 = smul.u32 128, %s299
        %v302 = vld [vmem:[%s290] sm:$0xff]
        %v303 = vld [vmem:[%s290 + $0x8] sm:$0xff]
        %v304 = vld [vmem:[%s290 + $0x10] sm:$0xff]
        %v305 = vld [vmem:[%s290 + $0x18] sm:$0xff]
        %v306 = vld [vmem:[%s290 + $0x20] sm:$0xff]
        %v307 = vld [vmem:[%s290 + $0x28] sm:$0xff]
        %v308 = vld [vmem:[%s290 + $0x30] sm:$0xff]
        %v309 = vld [vmem:[%s290 + $0x38] sm:$0xff]
        %v310 = vld [vmem:[%s290 + $0x40] sm:$0xff]
        %v311 = vld [vmem:[%s290 + $0x48] sm:$0xff]
        %v312 = vld [vmem:[%s290 + $0x50] sm:$0xff]
        %v313 = vld [vmem:[%s290 + $0x58] sm:$0xff]
        %v314 = vld [vmem:[%s290 + $0x60] sm:$0xff]
        %v315 = vld [vmem:[%s290 + $0x68] sm:$0xff]
        %v316 = vld [vmem:[%s290 + $0x70] sm:$0xff]
        %v317 = vld [vmem:[%s290 + $0x78] sm:$0xff]
        %v318 = vpack.c.bf16 %v303, %v302
        %v319 = vpack.c.bf16 %v305, %v304
        %v320 = vpack.c.bf16 %v307, %v306
        %v321 = vpack.c.bf16 %v309, %v308
        %v322 = vpack.c.bf16 %v311, %v310
        %v323 = vpack.c.bf16 %v313, %v312
        %v324 = vpack.c.bf16 %v315, %v314
        %v325 = vpack.c.bf16 %v317, %v316
        %v326 = vld [vmem:[%s1] sm:$0xff]
        %v327 = vld [vmem:[%s1 + $0x8] sm:$0xff]
        %v328 = vld [vmem:[%s1 + $0x10] sm:$0xff]
        %v329 = vld [vmem:[%s1 + $0x18] sm:$0xff]
        %v330 = vld [vmem:[%s1 + $0x20] sm:$0xff]
        %v331 = vld [vmem:[%s1 + $0x28] sm:$0xff]
        %v332 = vld [vmem:[%s1 + $0x30] sm:$0xff]
        %v333 = vld [vmem:[%s1 + $0x38] sm:$0xff]
        %v334 = vld [vmem:[%s2] sm:$0x3]
        %v336 = vlaneseq
        %v337 = vshrl.u32 %v336, 7
        %v338 = vsub.s32 0, %v337
        %v339 = vrot.slane %v334, %v338
        %v340 = vlaneseq
        %v341 = vshrl.u32 %v340, 7
        %v342 = vsub.s32 1, %v341
        %v343 = vrot.slane %v334, %v342
        %v354 = vunpack.c.l.b16 %v326
        %v355 = vunpack.c.h.b16 %v326
        %v356 = vunpack.c.l.b16 %v327
        %v357 = vunpack.c.h.b16 %v327
        %v358 = vunpack.c.l.b16 %v328
        %v359 = vunpack.c.h.b16 %v328
        %v360 = vunpack.c.l.b16 %v329
        %v361 = vunpack.c.h.b16 %v329
        %v362 = vunpack.c.l.b16 %v330
        %v363 = vunpack.c.h.b16 %v330
        %v364 = vunpack.c.l.b16 %v331
        %v365 = vunpack.c.h.b16 %v331
        %v366 = vunpack.c.l.b16 %v332
        %v367 = vunpack.c.h.b16 %v332
        %v368 = vunpack.c.l.b16 %v333
        %v369 = vunpack.c.h.b16 %v333
        %v370 = vpack.c.b16 %v356, %v354
        %v371 = vpack.c.b16 %v357, %v355
        %v372 = vpack.c.b16 %v360, %v358
        %v373 = vpack.c.b16 %v361, %v359
        %v374 = vpack.c.b16 %v364, %v362
        %v375 = vpack.c.b16 %v365, %v363
        %v376 = vpack.c.b16 %v368, %v366
        %v377 = vpack.c.b16 %v369, %v367
        %vm386 = vcmask 523264
        %v388 = vsel %vm386, %v318, 0
        %v391 = vsel %vm386, %v319, 0
        %v394 = vsel %vm386, %v320, 0
        %v397 = vsel %vm386, %v321, 0
        %v400 = vsel %vm386, %v322, 0
        %v403 = vsel %vm386, %v323, 0
        %v406 = vsel %vm386, %v324, 0
        %v409 = vsel %vm386, %v325, 0
        %411 = vmatprep.subr.bf16.mxu0 0
        %412 = vmatpush1.bf16.msra.mxu0 0
        %413 = vmatprep.subr.bf16.mxu0 0
        %414 = vmatpush1.bf16.msra.mxu0 0
        %415 = vmatprep.subr.bf16.mxu0 0
        %416 = vmatpush1.bf16.msra.mxu0 0
        %417 = vmatprep.subr.bf16.mxu0 0
        %418 = vmatpush1.bf16.msra.mxu0 0
        %419 = vmatprep.subr.bf16.mxu0 %v377
        %420 = vmatpush1.bf16.msra.mxu0 %v376
        %421 = vmatprep.subr.bf16.mxu0 %v375
        %422 = vmatpush1.bf16.msra.mxu0 %v374
        %423 = vmatprep.subr.bf16.mxu0 %v373
        %424 = vmatpush1.bf16.msra.mxu0 %v372
        %425 = vmatprep.subr.bf16.mxu0 %v371
        %426 = vmatpush1.bf16.msra.mxu0 %v370
        %427 = vmatprep.subr.bf16.mxu0 0
        %428 = vmatpush2.bf16.msra.mxu0 0
        %429 = vmatprep.subr.bf16.mxu0 0
        %430 = vmatpush2.bf16.msra.mxu0 0
        %431 = vmatprep.subr.bf16.mxu0 0
        %432 = vmatpush2.bf16.msra.mxu0 0
        %433 = vmatprep.subr.bf16.mxu0 0
        %434 = vmatpush2.bf16.msra.mxu0 0
        %435 = vmatprep.subr.bf16.mxu0 0
        %436 = vmatpush2.bf16.msra.mxu0 0
        %437 = vmatprep.subr.bf16.mxu0 0
        %438 = vmatpush2.bf16.msra.mxu0 0
        %439 = vmatprep.subr.bf16.mxu0 0
        %440 = vmatpush2.bf16.msra.mxu0 0
        %441 = vmatprep.subr.bf16.mxu0 0
        %442 = vmatpush2.bf16.msra.mxu0 0
        %443 = vmatprep.mubr.bf16.mxu0 0
        %444 = vmatmul.mubr.bf16.gmra.mxu0 %v388
        %v445 = vpop.f32.mrf.mxu0
        %v446 = vadd.f32 %v339, %v445
        %v447 = vpop.f32.mrf.mxu0
        %v448 = vadd.f32 %v343, %v447
        %v449 = vpop.f32.mrf.mxu0
        %v450 = vadd.f32 %v339, %v449
        %v451 = vpop.f32.mrf.mxu0
        %v452 = vadd.f32 %v343, %v451
        %453 = vmatprep.mubr.bf16.mxu0 0
        %454 = vmatmul.mubr.bf16.gmra.mxu0 %v391
        %v455 = vpop.f32.mrf.mxu0
        %v456 = vadd.f32 %v339, %v455
        %v457 = vpop.f32.mrf.mxu0
        %v458 = vadd.f32 %v343, %v457
        %v459 = vpop.f32.mrf.mxu0
        %v460 = vadd.f32 %v339, %v459
        %v461 = vpop.f32.mrf.mxu0
        %v462 = vadd.f32 %v343, %v461
        %463 = vmatprep.mubr.bf16.mxu0 0
        %464 = vmatmul.mubr.bf16.gmra.mxu0 %v394
        %v465 = vpop.f32.mrf.mxu0
        %v466 = vadd.f32 %v339, %v465
        %v467 = vpop.f32.mrf.mxu0
        %v468 = vadd.f32 %v343, %v467
        %v469 = vpop.f32.mrf.mxu0
        %v470 = vadd.f32 %v339, %v469
        %v471 = vpop.f32.mrf.mxu0
        %v472 = vadd.f32 %v343, %v471
        %473 = vmatprep.mubr.bf16.mxu0 0
        %474 = vmatmul.mubr.bf16.gmra.mxu0 %v397
        %v475 = vpop.f32.mrf.mxu0
        %v476 = vadd.f32 %v339, %v475
        %v477 = vpop.f32.mrf.mxu0
        %v478 = vadd.f32 %v343, %v477
        %v479 = vpop.f32.mrf.mxu0
        %v480 = vadd.f32 %v339, %v479
        %v481 = vpop.f32.mrf.mxu0
        %v482 = vadd.f32 %v343, %v481
        %483 = vmatprep.mubr.bf16.mxu0 0
        %484 = vmatmul.mubr.bf16.gmra.mxu0 %v400
        %v485 = vpop.f32.mrf.mxu0
        %v486 = vadd.f32 %v339, %v485
        %v487 = vpop.f32.mrf.mxu0
        %v488 = vadd.f32 %v343, %v487
        %v489 = vpop.f32.mrf.mxu0
        %v490 = vadd.f32 %v339, %v489
        %v491 = vpop.f32.mrf.mxu0
        %v492 = vadd.f32 %v343, %v491
        %493 = vmatprep.mubr.bf16.mxu0 0
        %494 = vmatmul.mubr.bf16.gmra.mxu0 %v403
        %v495 = vpop.f32.mrf.mxu0
        %v496 = vadd.f32 %v339, %v495
        %v497 = vpop.f32.mrf.mxu0
        %v498 = vadd.f32 %v343, %v497
        %v499 = vpop.f32.mrf.mxu0
        %v500 = vadd.f32 %v339, %v499
        %v501 = vpop.f32.mrf.mxu0
        %v502 = vadd.f32 %v343, %v501
        %503 = vmatprep.mubr.bf16.mxu0 0
        %504 = vmatmul.mubr.bf16.gmra.mxu0 %v406
        %v505 = vpop.f32.mrf.mxu0
        %v506 = vadd.f32 %v339, %v505
        %v507 = vpop.f32.mrf.mxu0
        %v508 = vadd.f32 %v343, %v507
        %v509 = vpop.f32.mrf.mxu0
        %v510 = vadd.f32 %v339, %v509
        %v511 = vpop.f32.mrf.mxu0
        %v512 = vadd.f32 %v343, %v511
        %513 = vmatprep.mubr.bf16.mxu0 0
        %514 = vmatmul.mubr.bf16.gmra.mxu0 %v409
        %v515 = vpop.f32.mrf.mxu0
        %v516 = vadd.f32 %v339, %v515
        %v517 = vpop.f32.mrf.mxu0
        %v518 = vadd.f32 %v343, %v517
        %v519 = vpop.f32.mrf.mxu0
        %v520 = vadd.f32 %v339, %v519
        %v521 = vpop.f32.mrf.mxu0
        %v522 = vadd.f32 %v343, %v521
        %523 = vdwg.mxu0
        %v524 = vmax.f32 %v446, 0.0
        %v525 = vmax.f32 %v448, 0.0
        %v526 = vmax.f32 %v450, 0.0
        %v527 = vmax.f32 %v452, 0.0
        %v528 = vmax.f32 %v456, 0.0
        %v529 = vmax.f32 %v458, 0.0
        %v530 = vmax.f32 %v460, 0.0
        %v531 = vmax.f32 %v462, 0.0
        %v532 = vmax.f32 %v466, 0.0
        %v533 = vmax.f32 %v468, 0.0
        %v534 = vmax.f32 %v470, 0.0
        %v535 = vmax.f32 %v472, 0.0
        %v536 = vmax.f32 %v476, 0.0
        %v537 = vmax.f32 %v478, 0.0
        %v538 = vmax.f32 %v480, 0.0
        %v539 = vmax.f32 %v482, 0.0
        %v540 = vmax.f32 %v486, 0.0
        %v541 = vmax.f32 %v488, 0.0
        %v542 = vmax.f32 %v490, 0.0
        %v543 = vmax.f32 %v492, 0.0
        %v544 = vmax.f32 %v496, 0.0
        %v545 = vmax.f32 %v498, 0.0
        %v546 = vmax.f32 %v500, 0.0
        %v547 = vmax.f32 %v502, 0.0
        %v548 = vmax.f32 %v506, 0.0
        %v549 = vmax.f32 %v508, 0.0
        %v550 = vmax.f32 %v510, 0.0
        %v551 = vmax.f32 %v512, 0.0
        %v552 = vmax.f32 %v516, 0.0
        %v553 = vmax.f32 %v518, 0.0
        %v554 = vmax.f32 %v520, 0.0
        %v555 = vmax.f32 %v522, 0.0
        %v556 = vpack.c.bf16 %v526, %v524
        %v557 = vpack.c.bf16 %v527, %v525
        %v558 = vpack.c.bf16 %v530, %v528
        %v559 = vpack.c.bf16 %v531, %v529
        %v560 = vpack.c.bf16 %v534, %v532
        %v561 = vpack.c.bf16 %v535, %v533
        %v562 = vpack.c.bf16 %v538, %v536
        %v563 = vpack.c.bf16 %v539, %v537
        %v564 = vpack.c.bf16 %v542, %v540
        %v565 = vpack.c.bf16 %v543, %v541
        %v566 = vpack.c.bf16 %v546, %v544
        %v567 = vpack.c.bf16 %v547, %v545
        %v568 = vpack.c.bf16 %v550, %v548
        %v569 = vpack.c.bf16 %v551, %v549
        %v570 = vpack.c.bf16 %v554, %v552
        %v571 = vpack.c.bf16 %v555, %v553
        %v572 = vld [vmem:[%s3] sm:$0xff]
        %v573 = vld [vmem:[%s3 + $0x8] sm:$0xff]
        %v574 = vld [vmem:[%s3 + $0x10] sm:$0xff]
        %v575 = vld [vmem:[%s3 + $0x18] sm:$0xff]
        %v576 = vld [vmem:[%s3 + $0x20] sm:$0xff]
        %v577 = vld [vmem:[%s3 + $0x28] sm:$0xff]
        %v578 = vld [vmem:[%s3 + $0x30] sm:$0xff]
        %v579 = vld [vmem:[%s3 + $0x38] sm:$0xff]
        %v580 = vld [vmem:[%s3 + $0x40] sm:$0xff]
        %v581 = vld [vmem:[%s3 + $0x48] sm:$0xff]
        %v582 = vld [vmem:[%s3 + $0x50] sm:$0xff]
        %v583 = vld [vmem:[%s3 + $0x58] sm:$0xff]
        %v584 = vld [vmem:[%s3 + $0x60] sm:$0xff]
        %v585 = vld [vmem:[%s3 + $0x68] sm:$0xff]
        %v586 = vld [vmem:[%s3 + $0x70] sm:$0xff]
        %v587 = vld [vmem:[%s3 + $0x78] sm:$0xff]
        %v588 = vld [vmem:[%s3 + $0x80] sm:$0xff]
        %v589 = vld [vmem:[%s3 + $0x88] sm:$0xff]
        %v590 = vld [vmem:[%s3 + $0x90] sm:$0xff]
        %v591 = vld [vmem:[%s3 + $0x98] sm:$0xff]
        %v592 = vld [vmem:[%s3 + $0xa0] sm:$0xff]
        %v593 = vld [vmem:[%s3 + $0xa8] sm:$0xff]
        %v594 = vld [vmem:[%s3 + $0xb0] sm:$0xff]
        %v595 = vld [vmem:[%s3 + $0xb8] sm:$0xff]
        %v596 = vld [vmem:[%s3 + $0xc0] sm:$0xff]
        %v597 = vld [vmem:[%s3 + $0xc8] sm:$0xff]
        %v598 = vld [vmem:[%s3 + $0xd0] sm:$0xff]
        %v599 = vld [vmem:[%s3 + $0xd8] sm:$0xff]
        %v600 = vld [vmem:[%s3 + $0xe0] sm:$0xff]
        %v601 = vld [vmem:[%s3 + $0xe8] sm:$0xff]
        %v602 = vld [vmem:[%s3 + $0xf0] sm:$0xff]
        %v603 = vld [vmem:[%s3 + $0xf8] sm:$0xff]
        %v604 = vld [vmem:[%s4] sm:$0x3]
        %v606 = vlaneseq
        %v607 = vshrl.u32 %v606, 7
        %v608 = vsub.s32 0, %v607
        %v609 = vrot.slane %v604, %v608
        %v610 = vlaneseq
        %v611 = vshrl.u32 %v610, 7
        %v612 = vsub.s32 1, %v611
        %v613 = vrot.slane %v604, %v612
        %v648 = vunpack.c.l.b16 %v572
        %v649 = vunpack.c.h.b16 %v572
        %v650 = vunpack.c.l.b16 %v573
        %v651 = vunpack.c.h.b16 %v573
        %v652 = vunpack.c.l.b16 %v574
        %v653 = vunpack.c.h.b16 %v574
        %v654 = vunpack.c.l.b16 %v575
        %v655 = vunpack.c.h.b16 %v575
        %v656 = vunpack.c.l.b16 %v576
        %v657 = vunpack.c.h.b16 %v576
        %v658 = vunpack.c.l.b16 %v577
        %v659 = vunpack.c.h.b16 %v577
        %v660 = vunpack.c.l.b16 %v578
        %v661 = vunpack.c.h.b16 %v578
        %v662 = vunpack.c.l.b16 %v579
        %v663 = vunpack.c.h.b16 %v579
        %v664 = vunpack.c.l.b16 %v580
        %v665 = vunpack.c.h.b16 %v580
        %v666 = vunpack.c.l.b16 %v581
        %v667 = vunpack.c.h.b16 %v581
        %v668 = vunpack.c.l.b16 %v582
        %v669 = vunpack.c.h.b16 %v582
        %v670 = vunpack.c.l.b16 %v583
        %v671 = vunpack.c.h.b16 %v583
        %v672 = vunpack.c.l.b16 %v584
        %v673 = vunpack.c.h.b16 %v584
        %v674 = vunpack.c.l.b16 %v585
        %v675 = vunpack.c.h.b16 %v585
        %v676 = vunpack.c.l.b16 %v586
        %v677 = vunpack.c.h.b16 %v586
        %v678 = vunpack.c.l.b16 %v587
        %v679 = vunpack.c.h.b16 %v587
        %v680 = vunpack.c.l.b16 %v588
        %v681 = vunpack.c.h.b16 %v588
        %v682 = vunpack.c.l.b16 %v589
        %v683 = vunpack.c.h.b16 %v589
        %v684 = vunpack.c.l.b16 %v590
        %v685 = vunpack.c.h.b16 %v590
        %v686 = vunpack.c.l.b16 %v591
        %v687 = vunpack.c.h.b16 %v591
        %v688 = vunpack.c.l.b16 %v592
        %v689 = vunpack.c.h.b16 %v592
        %v690 = vunpack.c.l.b16 %v593
        %v691 = vunpack.c.h.b16 %v593
        %v692 = vunpack.c.l.b16 %v594
        %v693 = vunpack.c.h.b16 %v594
        %v694 = vunpack.c.l.b16 %v595
        %v695 = vunpack.c.h.b16 %v595
        %v696 = vunpack.c.l.b16 %v596
        %v697 = vunpack.c.h.b16 %v596
        %v698 = vunpack.c.l.b16 %v597
        %v699 = vunpack.c.h.b16 %v597
        %v700 = vunpack.c.l.b16 %v598
        %v701 = vunpack.c.h.b16 %v598
        %v702 = vunpack.c.l.b16 %v599
        %v703 = vunpack.c.h.b16 %v599
        %v704 = vunpack.c.l.b16 %v600
        %v705 = vunpack.c.h.b16 %v600
        %v706 = vunpack.c.l.b16 %v601
        %v707 = vunpack.c.h.b16 %v601
        %v708 = vunpack.c.l.b16 %v602
        %v709 = vunpack.c.h.b16 %v602
        %v710 = vunpack.c.l.b16 %v603
        %v711 = vunpack.c.h.b16 %v603
        %v712 = vpack.c.b16 %v650, %v648
        %v713 = vpack.c.b16 %v651, %v649
        %v714 = vpack.c.b16 %v654, %v652
        %v715 = vpack.c.b16 %v655, %v653
        %v716 = vpack.c.b16 %v658, %v656
        %v717 = vpack.c.b16 %v659, %v657
        %v718 = vpack.c.b16 %v662, %v660
        %v719 = vpack.c.b16 %v663, %v661
        %v720 = vpack.c.b16 %v666, %v664
        %v721 = vpack.c.b16 %v667, %v665
        %v722 = vpack.c.b16 %v670, %v668
        %v723 = vpack.c.b16 %v671, %v669
        %v724 = vpack.c.b16 %v674, %v672
        %v725 = vpack.c.b16 %v675, %v673
        %v726 = vpack.c.b16 %v678, %v676
        %v727 = vpack.c.b16 %v679, %v677
        %v728 = vpack.c.b16 %v682, %v680
        %v729 = vpack.c.b16 %v683, %v681
        %v730 = vpack.c.b16 %v686, %v684
        %v731 = vpack.c.b16 %v687, %v685
        %v732 = vpack.c.b16 %v690, %v688
        %v733 = vpack.c.b16 %v691, %v689
        %v734 = vpack.c.b16 %v694, %v692
        %v735 = vpack.c.b16 %v695, %v693
        %v736 = vpack.c.b16 %v698, %v696
        %v737 = vpack.c.b16 %v699, %v697
        %v738 = vpack.c.b16 %v702, %v700
        %v739 = vpack.c.b16 %v703, %v701
        %v740 = vpack.c.b16 %v706, %v704
        %v741 = vpack.c.b16 %v707, %v705
        %v742 = vpack.c.b16 %v710, %v708
        %v743 = vpack.c.b16 %v711, %v709
        %776 = vmatprep.subr.bf16.mxu0 %v727
        %777 = vmatpush1.bf16.msra.mxu0 %v726
        %778 = vmatprep.subr.bf16.mxu0 %v725
        %779 = vmatpush1.bf16.msra.mxu0 %v724
        %780 = vmatprep.subr.bf16.mxu0 %v723
        %781 = vmatpush1.bf16.msra.mxu0 %v722
        %782 = vmatprep.subr.bf16.mxu0 %v721
        %783 = vmatpush1.bf16.msra.mxu0 %v720
        %784 = vmatprep.subr.bf16.mxu0 %v719
        %785 = vmatpush1.bf16.msra.mxu0 %v718
        %786 = vmatprep.subr.bf16.mxu0 %v717
        %787 = vmatpush1.bf16.msra.mxu0 %v716
        %788 = vmatprep.subr.bf16.mxu0 %v715
        %789 = vmatpush1.bf16.msra.mxu0 %v714
        %790 = vmatprep.subr.bf16.mxu0 %v713
        %791 = vmatpush1.bf16.msra.mxu0 %v712
        %792 = vmatprep.subr.bf16.mxu0 %v743
        %793 = vmatpush2.bf16.msra.mxu0 %v742
        %794 = vmatprep.subr.bf16.mxu0 %v741
        %795 = vmatpush2.bf16.msra.mxu0 %v740
        %796 = vmatprep.subr.bf16.mxu0 %v739
        %797 = vmatpush2.bf16.msra.mxu0 %v738
        %798 = vmatprep.subr.bf16.mxu0 %v737
        %799 = vmatpush2.bf16.msra.mxu0 %v736
        %800 = vmatprep.subr.bf16.mxu0 %v735
        %801 = vmatpush2.bf16.msra.mxu0 %v734
        %802 = vmatprep.subr.bf16.mxu0 %v733
        %803 = vmatpush2.bf16.msra.mxu0 %v732
        %804 = vmatprep.subr.bf16.mxu0 %v731
        %805 = vmatpush2.bf16.msra.mxu0 %v730
        %806 = vmatprep.subr.bf16.mxu0 %v729
        %807 = vmatpush2.bf16.msra.mxu0 %v728
        %808 = vmatprep.mubr.bf16.mxu0 %v557
        %809 = vmatmul.mubr.bf16.gmra.mxu0 %v556
        %v810 = vpop.f32.mrf.mxu0
        %v811 = vadd.f32 %v609, %v810
        %v812 = vpop.f32.mrf.mxu0
        %v813 = vadd.f32 %v613, %v812
        %v814 = vpop.f32.mrf.mxu0
        %v815 = vadd.f32 %v609, %v814
        %v816 = vpop.f32.mrf.mxu0
        %v817 = vadd.f32 %v613, %v816
        %818 = vmatprep.mubr.bf16.mxu0 %v559
        %819 = vmatmul.mubr.bf16.gmra.mxu0 %v558
        %v820 = vpop.f32.mrf.mxu0
        %v821 = vadd.f32 %v609, %v820
        %v822 = vpop.f32.mrf.mxu0
        %v823 = vadd.f32 %v613, %v822
        %v824 = vpop.f32.mrf.mxu0
        %v825 = vadd.f32 %v609, %v824
        %v826 = vpop.f32.mrf.mxu0
        %v827 = vadd.f32 %v613, %v826
        %828 = vmatprep.mubr.bf16.mxu0 %v561
        %829 = vmatmul.mubr.bf16.gmra.mxu0 %v560
        %v830 = vpop.f32.mrf.mxu0
        %v831 = vadd.f32 %v609, %v830
        %v832 = vpop.f32.mrf.mxu0
        %v833 = vadd.f32 %v613, %v832
        %v834 = vpop.f32.mrf.mxu0
        %v835 = vadd.f32 %v609, %v834
        %v836 = vpop.f32.mrf.mxu0
        %v837 = vadd.f32 %v613, %v836
        %838 = vmatprep.mubr.bf16.mxu0 %v563
        %839 = vmatmul.mubr.bf16.gmra.mxu0 %v562
        %v840 = vpop.f32.mrf.mxu0
        %v841 = vadd.f32 %v609, %v840
        %v842 = vpop.f32.mrf.mxu0
        %v843 = vadd.f32 %v613, %v842
        %v844 = vpop.f32.mrf.mxu0
        %v845 = vadd.f32 %v609, %v844
        %v846 = vpop.f32.mrf.mxu0
        %v847 = vadd.f32 %v613, %v846
        %848 = vmatprep.mubr.bf16.mxu0 %v565
        %849 = vmatmul.mubr.bf16.gmra.mxu0 %v564
        %v850 = vpop.f32.mrf.mxu0
        %v851 = vadd.f32 %v609, %v850
        %v852 = vpop.f32.mrf.mxu0
        %v853 = vadd.f32 %v613, %v852
        %v854 = vpop.f32.mrf.mxu0
        %v855 = vadd.f32 %v609, %v854
        %v856 = vpop.f32.mrf.mxu0
        %v857 = vadd.f32 %v613, %v856
        %858 = vmatprep.mubr.bf16.mxu0 %v567
        %859 = vmatmul.mubr.bf16.gmra.mxu0 %v566
        %v860 = vpop.f32.mrf.mxu0
        %v861 = vadd.f32 %v609, %v860
        %v862 = vpop.f32.mrf.mxu0
        %v863 = vadd.f32 %v613, %v862
        %v864 = vpop.f32.mrf.mxu0
        %v865 = vadd.f32 %v609, %v864
        %v866 = vpop.f32.mrf.mxu0
        %v867 = vadd.f32 %v613, %v866
        %868 = vmatprep.mubr.bf16.mxu0 %v569
        %869 = vmatmul.mubr.bf16.gmra.mxu0 %v568
        %v870 = vpop.f32.mrf.mxu0
        %v871 = vadd.f32 %v609, %v870
        %v872 = vpop.f32.mrf.mxu0
        %v873 = vadd.f32 %v613, %v872
        %v874 = vpop.f32.mrf.mxu0
        %v875 = vadd.f32 %v609, %v874
        %v876 = vpop.f32.mrf.mxu0
        %v877 = vadd.f32 %v613, %v876
        %878 = vmatprep.mubr.bf16.mxu0 %v571
        %879 = vmatmul.mubr.bf16.gmra.mxu0 %v570
        %v880 = vpop.f32.mrf.mxu0
        %v881 = vadd.f32 %v609, %v880
        %v882 = vpop.f32.mrf.mxu0
        %v883 = vadd.f32 %v613, %v882
        %v884 = vpop.f32.mrf.mxu0
        %v885 = vadd.f32 %v609, %v884
        %v886 = vpop.f32.mrf.mxu0
        %v887 = vadd.f32 %v613, %v886
        %888 = vdwg.mxu0
        %v889 = vmax.f32 %v811, 0.0
        %v890 = vmax.f32 %v813, 0.0
        %v891 = vmax.f32 %v815, 0.0
        %v892 = vmax.f32 %v817, 0.0
        %v893 = vmax.f32 %v821, 0.0
        %v894 = vmax.f32 %v823, 0.0
        %v895 = vmax.f32 %v825, 0.0
        %v896 = vmax.f32 %v827, 0.0
        %v897 = vmax.f32 %v831, 0.0
        %v898 = vmax.f32 %v833, 0.0
        %v899 = vmax.f32 %v835, 0.0
        %v900 = vmax.f32 %v837, 0.0
        %v901 = vmax.f32 %v841, 0.0
        %v902 = vmax.f32 %v843, 0.0
        %v903 = vmax.f32 %v845, 0.0
        %v904 = vmax.f32 %v847, 0.0
        %v905 = vmax.f32 %v851, 0.0
        %v906 = vmax.f32 %v853, 0.0
        %v907 = vmax.f32 %v855, 0.0
        %v908 = vmax.f32 %v857, 0.0
        %v909 = vmax.f32 %v861, 0.0
        %v910 = vmax.f32 %v863, 0.0
        %v911 = vmax.f32 %v865, 0.0
        %v912 = vmax.f32 %v867, 0.0
        %v913 = vmax.f32 %v871, 0.0
        %v914 = vmax.f32 %v873, 0.0
        %v915 = vmax.f32 %v875, 0.0
        %v916 = vmax.f32 %v877, 0.0
        %v917 = vmax.f32 %v881, 0.0
        %v918 = vmax.f32 %v883, 0.0
        %v919 = vmax.f32 %v885, 0.0
        %v920 = vmax.f32 %v887, 0.0
        %v921 = vld [vmem:[%s5] sm:$0x3]
        %v923 = vlaneseq
        %v924 = vshrl.u32 %v923, 7
        %v925 = vsub.s32 0, %v924
        %v926 = vrot.slane %v921, %v925
        %v927 = vlaneseq
        %v928 = vshrl.u32 %v927, 7
        %v929 = vsub.s32 1, %v928
        %v930 = vrot.slane %v921, %v929
        %v933 = vmul.f32 %v889, %v926
        %v934 = vmul.f32 %v890, %v930
        %v935 = vmul.f32 %v891, %v926
        %v936 = vmul.f32 %v892, %v930
        %v937 = vmul.f32 %v893, %v926
        %v938 = vmul.f32 %v894, %v930
        %v939 = vmul.f32 %v895, %v926
        %v940 = vmul.f32 %v896, %v930
        %v941 = vmul.f32 %v897, %v926
        %v942 = vmul.f32 %v898, %v930
        %v943 = vmul.f32 %v899, %v926
        %v944 = vmul.f32 %v900, %v930
        %v945 = vmul.f32 %v901, %v926
        %v946 = vmul.f32 %v902, %v930
        %v947 = vmul.f32 %v903, %v926
        %v948 = vmul.f32 %v904, %v930
        %v949 = vmul.f32 %v905, %v926
        %v950 = vmul.f32 %v906, %v930
        %v951 = vmul.f32 %v907, %v926
        %v952 = vmul.f32 %v908, %v930
        %v953 = vmul.f32 %v909, %v926
        %v954 = vmul.f32 %v910, %v930
        %v955 = vmul.f32 %v911, %v926
        %v956 = vmul.f32 %v912, %v930
        %v957 = vmul.f32 %v913, %v926
        %v958 = vmul.f32 %v914, %v930
        %v959 = vmul.f32 %v915, %v926
        %v960 = vmul.f32 %v916, %v930
        %v961 = vmul.f32 %v917, %v926
        %v962 = vmul.f32 %v918, %v930
        %v963 = vmul.f32 %v919, %v926
        %v964 = vmul.f32 %v920, %v930
        %v965 = vadd.f32 %v933, %v934
        %966 = vadd.xlane.f32.xlu0 %v965
        %v967 = vpop.xlane.xlu0 %966
        %v968 = vadd.f32 %v935, %v936
        %969 = vadd.xlane.f32.xlu0 %v968
        %v970 = vpop.xlane.xlu0 %969
        %v971 = vadd.f32 %v937, %v938
        %972 = vadd.xlane.f32.xlu0 %v971
        %v973 = vpop.xlane.xlu0 %972
        %v974 = vadd.f32 %v939, %v940
        %975 = vadd.xlane.f32.xlu0 %v974
        %v976 = vpop.xlane.xlu0 %975
        %v977 = vadd.f32 %v941, %v942
        %978 = vadd.xlane.f32.xlu0 %v977
        %v979 = vpop.xlane.xlu0 %978
        %v980 = vadd.f32 %v943, %v944
        %981 = vadd.xlane.f32.xlu0 %v980
        %v982 = vpop.xlane.xlu0 %981
        %v983 = vadd.f32 %v945, %v946
        %984 = vadd.xlane.f32.xlu0 %v983
        %v985 = vpop.xlane.xlu0 %984
        %v986 = vadd.f32 %v947, %v948
        %987 = vadd.xlane.f32.xlu0 %v986
        %v988 = vpop.xlane.xlu0 %987
        %v989 = vadd.f32 %v949, %v950
        %990 = vadd.xlane.f32.xlu0 %v989
        %v991 = vpop.xlane.xlu0 %990
        %v992 = vadd.f32 %v951, %v952
        %993 = vadd.xlane.f32.xlu0 %v992
        %v994 = vpop.xlane.xlu0 %993
        %v995 = vadd.f32 %v953, %v954
        %996 = vadd.xlane.f32.xlu0 %v995
        %v997 = vpop.xlane.xlu0 %996
        %v998 = vadd.f32 %v955, %v956
        %999 = vadd.xlane.f32.xlu0 %v998
        %v1000 = vpop.xlane.xlu0 %999
        %v1001 = vadd.f32 %v957, %v958
        %1002 = vadd.xlane.f32.xlu0 %v1001
        %v1003 = vpop.xlane.xlu0 %1002
        %v1004 = vadd.f32 %v959, %v960
        %1005 = vadd.xlane.f32.xlu0 %v1004
        %v1006 = vpop.xlane.xlu0 %1005
        %v1007 = vadd.f32 %v961, %v962
        %1008 = vadd.xlane.f32.xlu0 %v1007
        %v1009 = vpop.xlane.xlu0 %1008
        %v1010 = vadd.f32 %v963, %v964
        %1011 = vadd.xlane.f32.xlu0 %v1010
        %v1012 = vpop.xlane.xlu0 %1011
        %s1013 = sld [smem:[#allocation2]]
        %v1014 = vstv %s1013
        %v1015 = vadd.f32 %v967, %v1014
        %v1016 = vadd.f32 %v970, %v1014
        %v1017 = vadd.f32 %v973, %v1014
        %v1018 = vadd.f32 %v976, %v1014
        %v1019 = vadd.f32 %v979, %v1014
        %v1020 = vadd.f32 %v982, %v1014
        %v1021 = vadd.f32 %v985, %v1014
        %v1022 = vadd.f32 %v988, %v1014
        %v1023 = vadd.f32 %v991, %v1014
        %v1024 = vadd.f32 %v994, %v1014
        %v1025 = vadd.f32 %v997, %v1014
        %v1026 = vadd.f32 %v1000, %v1014
        %v1027 = vadd.f32 %v1003, %v1014
        %v1028 = vadd.f32 %v1006, %v1014
        %v1029 = vadd.f32 %v1009, %v1014
        %v1030 = vadd.f32 %v1012, %v1014
        %vm1031 = vcmask 7168
        %1032 = vst.msk [vmem:[%s281] sm:$0xff] %vm1031, %v1015
        %1033 = vst.msk [vmem:[%s281 + $0x8] sm:$0xff] %vm1031, %v1016
        %1034 = vst.msk [vmem:[%s281 + $0x10] sm:$0xff] %vm1031, %v1017
        %1035 = vst.msk [vmem:[%s281 + $0x18] sm:$0xff] %vm1031, %v1018
        %1036 = vst.msk [vmem:[%s281 + $0x20] sm:$0xff] %vm1031, %v1019
        %1037 = vst.msk [vmem:[%s281 + $0x28] sm:$0xff] %vm1031, %v1020
        %1038 = vst.msk [vmem:[%s281 + $0x30] sm:$0xff] %vm1031, %v1021
        %1039 = vst.msk [vmem:[%s281 + $0x38] sm:$0xff] %vm1031, %v1022
        %1040 = vst.msk [vmem:[%s281 + $0x40] sm:$0xff] %vm1031, %v1023
        %1041 = vst.msk [vmem:[%s281 + $0x48] sm:$0xff] %vm1031, %v1024
        %1042 = vst.msk [vmem:[%s281 + $0x50] sm:$0xff] %vm1031, %v1025
        %1043 = vst.msk [vmem:[%s281 + $0x58] sm:$0xff] %vm1031, %v1026
        %1044 = vst.msk [vmem:[%s281 + $0x60] sm:$0xff] %vm1031, %v1027
        %1045 = vst.msk [vmem:[%s281 + $0x68] sm:$0xff] %vm1031, %v1028
        %1046 = vst.msk [vmem:[%s281 + $0x70] sm:$0xff] %vm1031, %v1029
        %1047 = vst.msk [vmem:[%s281 + $0x78] sm:$0xff] %vm1031, %v1030
        %s1048 = sand.u32 %s179, 1
        %s1049 = sand.u32 %s179, 1
        %s1050 = smul.addr %s1049, 128
        %s1051 = scalar_lea.vmem [#allocation3], %s1050
        // Predicated region
        $region49: #{tpu_custom_call.1} parent=47 // pred_check
          %p1052 = pneg %p189
        $region50: #{tpu_custom_call.1} parent=47 // pred_check_branch
          %1054 = sbr.rel (%p1052) target = $region52
        $region51: #{tpu_custom_call.1} parent=47 // pred_region
          %s1055 = smul.u32 16, %s19
          %s1056 = ssub.s32 25, %s1055
          %p1057 = scmp.lt.s32.totalorder %s1056, 16
          %s1058 = scalar_select %p1057, %s1056, 16
          %s1059 = smul.u32 128, %s1058
          %p1060 = scmp.ne.s32.totalorder 0, %s1059
          %s1061 = smul.addr %s1055, 8
          %s1062 = scalar_lea.vmem %s7, %s1061
          // Predicated region
          $region53: #{tpu_custom_call.1} parent=51 // pred_check
            %p1063 = pneg %p1060
          $region54: #{tpu_custom_call.1} parent=51 // pred_check_branch
            %1065 = sbr.rel (%p1063) target = $region56
          $region55: #{tpu_custom_call.1} parent=51 // pred_region
            // Predicated region
            $region57: #{tpu_custom_call.1} parent=55 // pred_check
              _
            $region58: #{tpu_custom_call.1} parent=55 // pred_check_branch
              %1067 = sbr.rel (0) target = $region60
            $region59: #{tpu_custom_call.1} parent=55 // pred_region
              // Predicated region
              $region79: #{tpu_custom_call.1} parent=59 // pred_check
                _
              $region80: #{tpu_custom_call.1} parent=59 // pred_check_branch
                %1147 = sbr.rel (0) target = $region82
              $region81: #{tpu_custom_call.1} parent=59 // pred_region
                %s1148 = sshrl.u32 %s1058, 4
                // While loop
                $region83: #{tpu_custom_call.1} parent=81 // loop_pre_header
                  _
                $region84: #{tpu_custom_call.1} parent=81 // loop_header
                  %s1150 = sphi 0, %s1152
                  %p1151 = scmp.ge.s32.totalorder %s1150, %s1148
                  %s1155 = sphi 0, %s1192
                  %s1156 = sphi %s1051, %s1195
                  %s1157 = sphi %s1062, %s1196
                $region85: #{tpu_custom_call.1} parent=81 // loop_header_branch
                  %1154 = sbr.rel (%p1151) target = $region89
                $region86: #{tpu_custom_call.1} parent=81 // loop_body
                  %v1158 = vld [vmem:[%s1156] sm:$0xff]
                  %1159 = vst [vmem:[%s1157] sm:$0xff] %v1158
                  %v1160 = vld [vmem:[%s1156 + $0x8] sm:$0xff]
                  %1161 = vst [vmem:[%s1157 + $0x8] sm:$0xff] %v1160
                  %v1162 = vld [vmem:[%s1156 + $0x10] sm:$0xff]
                  %1163 = vst [vmem:[%s1157 + $0x10] sm:$0xff] %v1162
                  %v1164 = vld [vmem:[%s1156 + $0x18] sm:$0xff]
                  %1165 = vst [vmem:[%s1157 + $0x18] sm:$0xff] %v1164
                  %v1166 = vld [vmem:[%s1156 + $0x20] sm:$0xff]
                  %1167 = vst [vmem:[%s1157 + $0x20] sm:$0xff] %v1166
                  %v1168 = vld [vmem:[%s1156 + $0x28] sm:$0xff]
                  %1169 = vst [vmem:[%s1157 + $0x28] sm:$0xff] %v1168
                  %v1170 = vld [vmem:[%s1156 + $0x30] sm:$0xff]
                  %1171 = vst [vmem:[%s1157 + $0x30] sm:$0xff] %v1170
                  %v1172 = vld [vmem:[%s1156 + $0x38] sm:$0xff]
                  %1173 = vst [vmem:[%s1157 + $0x38] sm:$0xff] %v1172
                  %v1174 = vld [vmem:[%s1156 + $0x40] sm:$0xff]
                  %1175 = vst [vmem:[%s1157 + $0x40] sm:$0xff] %v1174
                  %v1176 = vld [vmem:[%s1156 + $0x48] sm:$0xff]
                  %1177 = vst [vmem:[%s1157 + $0x48] sm:$0xff] %v1176
                  %v1178 = vld [vmem:[%s1156 + $0x50] sm:$0xff]
                  %1179 = vst [vmem:[%s1157 + $0x50] sm:$0xff] %v1178
                  %v1180 = vld [vmem:[%s1156 + $0x58] sm:$0xff]
                  %1181 = vst [vmem:[%s1157 + $0x58] sm:$0xff] %v1180
                  %v1182 = vld [vmem:[%s1156 + $0x60] sm:$0xff]
                  %1183 = vst [vmem:[%s1157 + $0x60] sm:$0xff] %v1182
                  %v1184 = vld [vmem:[%s1156 + $0x68] sm:$0xff]
                  %1185 = vst [vmem:[%s1157 + $0x68] sm:$0xff] %v1184
                  %v1186 = vld [vmem:[%s1156 + $0x70] sm:$0xff]
                  %1187 = vst [vmem:[%s1157 + $0x70] sm:$0xff] %v1186
                  %v1188 = vld [vmem:[%s1156 + $0x78] sm:$0xff]
                  %1189 = vst [vmem:[%s1157 + $0x78] sm:$0xff] %v1188
                  %s1190 = sadd.s32 1, %s1155
                  %p1191 = scmp.ge.s32.totalorder %s1190, %s1148
                  %s1192 = scalar_select %p1191, 0, %s1190
                  %s1193 = smul.u32 %s1192, 128
                  %s1194 = smul.u32 %s1192, 128
                  %s1195 = scalar_lea.vmem %s1051, %s1193 [#allocation3]
                  %s1196 = scalar_lea.vmem %s1062, %s1194
                $region87: #{tpu_custom_call.1} parent=81 // loop_footer
                  %s1152 = sadd.s32 %s1150, 1
                $region88: #{tpu_custom_call.1} parent=81 // loop_footer_branch
                  %1149 = sbr.rel target = $region84
                $region89: #{tpu_custom_call.1} parent=81 // loop_exit
                  _
                %s1197 = sshrl.u32 %s1058, 4
                %s1198 = sand.u32 %s1058, 15
                %s1199 = smul.u32 %s1197, 16
                %s1200 = smul.u32 8, %s1199
                %s1201 = scalar_lea.vmem %s1051, %s1200 [#allocation3]
                %s1202 = smul.u32 8, %s1199
                %s1203 = scalar_lea.vmem %s1062, %s1202
                // While loop
                $region90: #{tpu_custom_call.1} parent=81 // loop_pre_header
                  _
                $region91: #{tpu_custom_call.1} parent=81 // loop_header
                  %s1205 = sphi 0, %s1207
                  %p1206 = scmp.ge.s32.totalorder %s1205, %s1198
                  %s1210 = sphi 0, %s1217
                  %s1211 = sphi %s1201, %s1220
                  %s1212 = sphi %s1203, %s1221
                $region92: #{tpu_custom_call.1} parent=81 // loop_header_branch
                  %1209 = sbr.rel (%p1206) target = $region96
                $region93: #{tpu_custom_call.1} parent=81 // loop_body
                  %v1213 = vld [vmem:[%s1211] sm:$0xff]
                  %1214 = vst [vmem:[%s1212] sm:$0xff] %v1213
                  %s1215 = sadd.s32 1, %s1210
                  %p1216 = scmp.ge.s32.totalorder %s1215, %s1198
                  %s1217 = scalar_select %p1216, 0, %s1215
                  %s1218 = smul.u32 %s1217, 8
                  %s1219 = smul.u32 %s1217, 8
                  %s1220 = scalar_lea.vmem %s1201, %s1218 [#allocation3]
                  %s1221 = scalar_lea.vmem %s1203, %s1219
                $region94: #{tpu_custom_call.1} parent=81 // loop_footer
                  %s1207 = sadd.s32 %s1205, 1
                $region95: #{tpu_custom_call.1} parent=81 // loop_footer_branch
                  %1204 = sbr.rel target = $region91
                $region96: #{tpu_custom_call.1} parent=81 // loop_exit
                  _
              $region82: #{tpu_custom_call.1} parent=59 // pred_fallthru
                _
              // Predicated region
              $region97: #{tpu_custom_call.1} parent=59 // pred_check
                _
              $region98: #{tpu_custom_call.1} parent=59 // pred_check_branch
                %1223 = sbr.rel target = $region100
              $region99: #{tpu_custom_call.1} parent=59 // pred_region
                _
              $region100: #{tpu_custom_call.1} parent=59 // pred_fallthru
                _
            $region60: #{tpu_custom_call.1} parent=55 // pred_fallthru
              _
            // Predicated region
            $region61: #{tpu_custom_call.1} parent=55 // pred_check
              _
            $region62: #{tpu_custom_call.1} parent=55 // pred_check_branch
              %1069 = sbr.rel target = $region64
            $region63: #{tpu_custom_call.1} parent=55 // pred_region
              %s1071 = ssub.s32 256, 1
              %s1072 = sshrl.u32 %s1058, 4
              // While loop
              $region65: #{tpu_custom_call.1} parent=63 // loop_pre_header
                _
              $region66: #{tpu_custom_call.1} parent=63 // loop_header
                %s1074 = sphi 0, %s1076
                %p1075 = scmp.ge.s32.totalorder %s1074, %s1072
                %s1079 = sphi 0, %s1116
                %s1080 = sphi %s1051, %s1119
                %s1081 = sphi %s1062, %s1120
              $region67: #{tpu_custom_call.1} parent=63 // loop_header_branch
                %1078 = sbr.rel (%p1075) target = $region71
              $region68: #{tpu_custom_call.1} parent=63 // loop_body
                %v1082 = vld [vmem:[%s1080] sm:%s1071]
                %1083 = vst [vmem:[%s1081] sm:%s1071] %v1082
                %v1084 = vld [vmem:[%s1080 + $0x8] sm:%s1071]
                %1085 = vst [vmem:[%s1081 + $0x8] sm:%s1071] %v1084
                %v1086 = vld [vmem:[%s1080 + $0x10] sm:%s1071]
                %1087 = vst [vmem:[%s1081 + $0x10] sm:%s1071] %v1086
                %v1088 = vld [vmem:[%s1080 + $0x18] sm:%s1071]
                %1089 = vst [vmem:[%s1081 + $0x18] sm:%s1071] %v1088
                %v1090 = vld [vmem:[%s1080 + $0x20] sm:%s1071]
                %1091 = vst [vmem:[%s1081 + $0x20] sm:%s1071] %v1090
                %v1092 = vld [vmem:[%s1080 + $0x28] sm:%s1071]
                %1093 = vst [vmem:[%s1081 + $0x28] sm:%s1071] %v1092
                %v1094 = vld [vmem:[%s1080 + $0x30] sm:%s1071]
                %1095 = vst [vmem:[%s1081 + $0x30] sm:%s1071] %v1094
                %v1096 = vld [vmem:[%s1080 + $0x38] sm:%s1071]
                %1097 = vst [vmem:[%s1081 + $0x38] sm:%s1071] %v1096
                %v1098 = vld [vmem:[%s1080 + $0x40] sm:%s1071]
                %1099 = vst [vmem:[%s1081 + $0x40] sm:%s1071] %v1098
                %v1100 = vld [vmem:[%s1080 + $0x48] sm:%s1071]
                %1101 = vst [vmem:[%s1081 + $0x48] sm:%s1071] %v1100
                %v1102 = vld [vmem:[%s1080 + $0x50] sm:%s1071]
                %1103 = vst [vmem:[%s1081 + $0x50] sm:%s1071] %v1102
                %v1104 = vld [vmem:[%s1080 + $0x58] sm:%s1071]
                %1105 = vst [vmem:[%s1081 + $0x58] sm:%s1071] %v1104
                %v1106 = vld [vmem:[%s1080 + $0x60] sm:%s1071]
                %1107 = vst [vmem:[%s1081 + $0x60] sm:%s1071] %v1106
                %v1108 = vld [vmem:[%s1080 + $0x68] sm:%s1071]
                %1109 = vst [vmem:[%s1081 + $0x68] sm:%s1071] %v1108
                %v1110 = vld [vmem:[%s1080 + $0x70] sm:%s1071]
                %1111 = vst [vmem:[%s1081 + $0x70] sm:%s1071] %v1110
                %v1112 = vld [vmem:[%s1080 + $0x78] sm:%s1071]
                %1113 = vst [vmem:[%s1081 + $0x78] sm:%s1071] %v1112
                %s1114 = sadd.s32 1, %s1079
                %p1115 = scmp.ge.s32.totalorder %s1114, %s1072
                %s1116 = scalar_select %p1115, 0, %s1114
                %s1117 = smul.u32 %s1116, 128
                %s1118 = smul.u32 %s1116, 128
                %s1119 = scalar_lea.vmem %s1051, %s1117 [#allocation3]
                %s1120 = scalar_lea.vmem %s1062, %s1118
              $region69: #{tpu_custom_call.1} parent=63 // loop_footer
                %s1076 = sadd.s32 %s1074, 1
              $region70: #{tpu_custom_call.1} parent=63 // loop_footer_branch
                %1073 = sbr.rel target = $region66
              $region71: #{tpu_custom_call.1} parent=63 // loop_exit
                _
              %s1121 = sshrl.u32 %s1058, 4
              %s1122 = sand.u32 %s1058, 15
              %s1123 = smul.u32 %s1121, 16
              %s1124 = smul.u32 8, %s1123
              %s1125 = scalar_lea.vmem %s1051, %s1124 [#allocation3]
              %s1126 = smul.u32 8, %s1123
              %s1127 = scalar_lea.vmem %s1062, %s1126
              // While loop
              $region72: #{tpu_custom_call.1} parent=63 // loop_pre_header
                _
              $region73: #{tpu_custom_call.1} parent=63 // loop_header
                %s1129 = sphi 0, %s1131
                %p1130 = scmp.ge.s32.totalorder %s1129, %s1122
                %s1134 = sphi 0, %s1141
                %s1135 = sphi %s1125, %s1144
                %s1136 = sphi %s1127, %s1145
              $region74: #{tpu_custom_call.1} parent=63 // loop_header_branch
                %1133 = sbr.rel (%p1130) target = $region78
              $region75: #{tpu_custom_call.1} parent=63 // loop_body
                %v1137 = vld [vmem:[%s1135] sm:%s1071]
                %1138 = vst [vmem:[%s1136] sm:%s1071] %v1137
                %s1139 = sadd.s32 1, %s1134
                %p1140 = scmp.ge.s32.totalorder %s1139, %s1122
                %s1141 = scalar_select %p1140, 0, %s1139
                %s1142 = smul.u32 %s1141, 8
                %s1143 = smul.u32 %s1141, 8
                %s1144 = scalar_lea.vmem %s1125, %s1142 [#allocation3]
                %s1145 = scalar_lea.vmem %s1127, %s1143
              $region76: #{tpu_custom_call.1} parent=63 // loop_footer
                %s1131 = sadd.s32 %s1129, 1
              $region77: #{tpu_custom_call.1} parent=63 // loop_footer_branch
                %1128 = sbr.rel target = $region73
              $region78: #{tpu_custom_call.1} parent=63 // loop_exit
                _
            $region64: #{tpu_custom_call.1} parent=55 // pred_fallthru
              _
          $region56: #{tpu_custom_call.1} parent=51 // pred_fallthru
            _
          %1224 = vnop
        $region52: #{tpu_custom_call.1} parent=47 // pred_fallthru
          _
      $region48: #{tpu_custom_call.1} parent=5 // pred_fallthru
        _
      %p1225 = scmp.le.s32.totalorder 2, %s14
      // Predicated region
      $region101: #{tpu_custom_call.1} parent=5 // pred_check
        %p1226 = pneg %p1225
      $region102: #{tpu_custom_call.1} parent=5 // pred_check_branch
        %1228 = sbr.rel (%p1226) target = $region104
      $region103: #{tpu_custom_call.1} parent=5 // pred_region
        %s1229 = ssub.s32 %s14, 2
        // Predicated region
        $region105: #{tpu_custom_call.1} parent=103 // pred_check
          %p1230 = pneg %p195
        $region106: #{tpu_custom_call.1} parent=103 // pred_check_branch
          %1232 = sbr.rel (%p1230) target = $region108
        $region107: #{tpu_custom_call.1} parent=103 // pred_region
          %s1233 = sand.u32 %s180, 1
          %s1234 = sand.u32 %s180, 1
          %s1235 = smul.addr %s1234, 128
          %s1236 = scalar_lea.vmem [#allocation3], %s1235
        $region108: #{tpu_custom_call.1} parent=103 // pred_fallthru
          _
      $region104: #{tpu_custom_call.1} parent=5 // pred_fallthru
        _
    $region6: #{tpu_custom_call.1} parent=1 // loop_footer
      %s18 = sadd.s32 1, %s14
    $region7: #{tpu_custom_call.1} parent=1 // loop_footer_branch
      %13 = sbr.rel target = $region3
    $region8: #{tpu_custom_call.1} parent=1 // loop_exit
      _

</llo_original>
